<compile_context>
chip_gen: v7x
topology: tpu7x:2x2x1
jax: 0.10.0
libtpu: 0.0.40
codegen_flags: <defaults>
</compile_context>

<pallas_src>
import jax
import jax.numpy as jnp
from jax.experimental import pallas as pl
from jax.experimental.pallas import tpu as pltpu

TRIM_LEN = 256

# ---------------------------------------------------------------------------
# Variant 1: manual HBM->HBM DMA (default).
# ---------------------------------------------------------------------------

_MAX_DMA_CHUNKS = 8  # concurrent DMA descriptors / semaphores


def _make_dma_trim_kernel(rows, chunk, n_chunks):
    """Kernel: copy x[:, :TRIM_LEN] (HBM) -> out (HBM) via n_chunks DMAs."""

    def kernel(x_hbm, o_hbm, sems):
        def desc(i):
            start = i * chunk
            size = min(chunk, rows - start)   # static python ints
            return pltpu.make_async_copy(
                x_hbm.at[pl.ds(start, size), pl.ds(0, TRIM_LEN)],
                o_hbm.at[pl.ds(start, size), pl.ds(0, TRIM_LEN)],
                sems.at[i],
            )

        # Launch every chunk first so the DMA queues overlap, then wait.
        for i in range(n_chunks):
            desc(i).start()
        for i in range(n_chunks):
            desc(i).wait()

    return kernel


def _trim_manual_dma(x2d, out_len):
    rows, _ = x2d.shape
    itemsize = jnp.dtype(x2d.dtype).itemsize

    n_chunks = min(_MAX_DMA_CHUNKS, rows)
    chunk = pl.cdiv(rows, n_chunks)
    n_chunks = pl.cdiv(rows, chunk)

    cost = pl.CostEstimate(
        flops=0, transcendentals=0,
        bytes_accessed=2 * rows * out_len * itemsize,
    )

    return pl.pallas_call(
        _make_dma_trim_kernel(rows, chunk, n_chunks),
        out_shape=jax.ShapeDtypeStruct((rows, out_len), x2d.dtype),
        in_specs=[pl.BlockSpec(memory_space=pl.ANY)],
        out_specs=pl.BlockSpec(memory_space=pl.ANY),
        scratch_shapes=[pltpu.SemaphoreType.DMA((n_chunks,))],
        cost_estimate=cost,
    )(x2d)


# ---------------------------------------------------------------------------
# Variant 2: BlockSpec-pipelined copy.
# ---------------------------------------------------------------------------

def _trim_copy_kernel(x_ref, o_ref):
    # x_ref: (tile_r, TRIM_LEN) window of the flattened input (already
    # restricted to the first 256 elements of the length axis by the spec).
    o_ref[...] = x_ref[...]


def _generation_tile_params():
    """Return (tile_bytes, vmem_limit_bytes or None) per TPU generation."""
    kind = ""
    try:
        kind = jax.devices()[0].device_kind.lower()
    except Exception:
        pass
    if "v7" in kind or "7x" in kind:
        # High HBM BW but only 64 MiB physical VMEM: 8 MiB tiles, 48 MiB scoped.
        return 8 * 1024 * 1024, 48 * 1024 * 1024
    if "v6" in kind:
        # 128 MiB physical VMEM: 6 MiB tiles; raise scoped limit for headroom.
        return 6 * 1024 * 1024, 64 * 1024 * 1024
    if "v5" in kind:
        # 16 MiB scoped default: 2 MiB tiles (3 in + 2 out buffers ~= 10 MiB).
        return 2 * 1024 * 1024, None
    # Unknown generation / interpreter: conservative.
    return 2 * 1024 * 1024, None


_MIN_GRID_STEPS = 4  # keep several grid steps so both v7x TensorCores get work


def _trim_pipeline(x2d, out_len):
    rows, _ = x2d.shape
    itemsize = jnp.dtype(x2d.dtype).itemsize
    tile_bytes, vmem_limit = _generation_tile_params()

    # Row tile: ~tile_bytes per buffer, multiple of 32 rows (covers f32/bf16/
    # int8 sublane packing under the (8,128) layout rule).
    tile_r = max(32, (tile_bytes // (out_len * itemsize)) // 32 * 32)

    # Cap the tile so medium/large problems still yield >= _MIN_GRID_STEPS
    # grid steps (dual-TC sharding on v7x + enough stages to fill the pipe).
    if rows >= _MIN_GRID_STEPS * 32:
        cap = ((pl.cdiv(rows, _MIN_GRID_STEPS) + 31) // 32) * 32
        tile_r = min(tile_r, cap)

    if rows <= tile_r:
        tile_r = rows  # full-extent blocks are always layout-legal

    grid = (pl.cdiv(rows, tile_r),)

    # 3-deep input buffering hides strided-read jitter; output stays at 2.
    try:
        in_spec = pl.BlockSpec((tile_r, out_len), lambda r: (r, 0),
                               pipeline_mode=pl.Buffered(3))
    except TypeError:  # older jax without pipeline_mode on BlockSpec
        in_spec = pl.BlockSpec((tile_r, out_len), lambda r: (r, 0))

    cost = pl.CostEstimate(
        flops=0, transcendentals=0,
        bytes_accessed=2 * rows * out_len * itemsize,
    )

    return pl.pallas_call(
        _trim_copy_kernel,
        out_shape=jax.ShapeDtypeStruct((rows, out_len), x2d.dtype),
        grid_spec=pltpu.PrefetchScalarGridSpec(
            num_scalar_prefetch=0,
            grid=grid,
            in_specs=[in_spec],
            out_specs=pl.BlockSpec((tile_r, out_len), lambda r: (r, 0)),
        ),
        compiler_params=pltpu.CompilerParams(
            dimension_semantics=("parallel",),
            vmem_limit_bytes=vmem_limit,
        ),
        cost_estimate=cost,
    )(x2d)


# ---------------------------------------------------------------------------
# Public wrapper (PyTorch Trim.forward equivalent).
# ---------------------------------------------------------------------------

def trim(x: jax.Array, method: str = "dma") -> jax.Array:
    """Equivalent of PyTorch `x[:, :, :256]` for a (B, C, L) array."""
    B, C, L = x.shape

    # PyTorch slicing clamps to the available length: when nothing is trimmed
    # the op is the identity -> skip the kernel entirely (no HBM traffic).
    if L <= TRIM_LEN:
        return x

    rows = B * C
    if rows == 0:
        return x[:, :, :TRIM_LEN]  # empty batch/channels: nothing to copy

    out_len = TRIM_LEN
    x2d = x.reshape(rows, L)  # free reshape: rows are contiguous in memory

    if method == "dma":
        out2d = _trim_manual_dma(x2d, out_len)
    elif method == "pipeline":
        out2d = _trim_pipeline(x2d, out_len)
    else:
        raise ValueError(f"unknown method: {method!r}")

    return out2d.reshape(B, C, out_len)


if __name__ == "__main__":
    key = jax.random.PRNGKey(0)

    # Small-but-representative shape: L = 512 > 256 so the trim is exercised.
    B, C, L = 2, 4, 512
    x = jax.random.normal(key, (B, C, L), dtype=jnp.float32)
    ref = x[:, :, :TRIM_LEN]

    # Default path: manual HBM->HBM DMA.
    y_dma = jax.block_until_ready(trim(x, method="dma"))
    assert y_dma.shape == ref.shape, (y_dma.shape, ref.shape)
    assert jnp.array_equal(y_dma, ref)

    # Pipelined-copy variant.
    y_pipe = jax.block_until_ready(trim(x, method="pipeline"))
    assert y_pipe.shape == ref.shape, (y_pipe.shape, ref.shape)
    assert jnp.array_equal(y_pipe, ref)

    # Early-out path (L <= 256 -> identity, matches PyTorch's clamped slice).
    x_short = jax.random.normal(key, (B, C, 128), dtype=jnp.float32)
    y_short = jax.block_until_ready(trim(x_short))
    assert jnp.array_equal(y_short, x_short[:, :, :TRIM_LEN])

    print("KERNEL_OK")
</pallas_src>

<mosaic_0001>
module attributes {stable_mosaic.version = 11 : i64} {
  func.func @kernel(%arg0: memref<8x512xf32, #tpu.memory_space<any>>, %arg1: memref<8x256xf32, #tpu.memory_space<any>>, %arg2: memref<8x!tpu.dma_semaphore, #tpu.memory_space<semaphore_mem>>) attributes {dimension_semantics = [], scalar_prefetch = 0 : i64, scratch_operands = 1 : i64, tpu.core_type = #tpu.core_type<tc>} {
    %c0_i32 = arith.constant 0 : i32
    %c0_i32_0 = arith.constant 0 : i32
    %c0_i32_1 = arith.constant 0 : i32
    %0 = tpu.memref_slice %arg0[%c0_i32_0, %c0_i32_1] : memref<8x512xf32, #tpu.memory_space<any>> -> memref<1x256xf32, #tpu.memory_space<any>>
    %c0_i32_2 = arith.constant 0 : i32
    %c0_i32_3 = arith.constant 0 : i32
    %1 = tpu.memref_slice %arg1[%c0_i32_2, %c0_i32_3] : memref<8x256xf32, #tpu.memory_space<any>> -> memref<1x256xf32, #tpu.memory_space<any>>
    %2 = tpu.memref_slice %arg2[%c0_i32] : memref<8x!tpu.dma_semaphore, #tpu.memory_space<semaphore_mem>> -> memref<1x!tpu.dma_semaphore, #tpu.memory_space<semaphore_mem>>
    %3 = tpu.memref_squeeze %2 : memref<1x!tpu.dma_semaphore, #tpu.memory_space<semaphore_mem>> -> memref<!tpu.dma_semaphore, #tpu.memory_space<semaphore_mem>>
    tpu.enqueue_dma source(%0 : memref<1x256xf32, #tpu.memory_space<any>>) target(%1 : memref<1x256xf32, #tpu.memory_space<any>>) target_semaphore(%3 : memref<!tpu.dma_semaphore, #tpu.memory_space<semaphore_mem>>)
    %c1_i32 = arith.constant 1 : i32
    %c1_i32_4 = arith.constant 1 : i32
    %c0_i32_5 = arith.constant 0 : i32
    %4 = tpu.memref_slice %arg0[%c1_i32_4, %c0_i32_5] : memref<8x512xf32, #tpu.memory_space<any>> -> memref<1x256xf32, #tpu.memory_space<any>>
    %c1_i32_6 = arith.constant 1 : i32
    %c0_i32_7 = arith.constant 0 : i32
    %5 = tpu.memref_slice %arg1[%c1_i32_6, %c0_i32_7] : memref<8x256xf32, #tpu.memory_space<any>> -> memref<1x256xf32, #tpu.memory_space<any>>
    %6 = tpu.memref_slice %arg2[%c1_i32] : memref<8x!tpu.dma_semaphore, #tpu.memory_space<semaphore_mem>> -> memref<1x!tpu.dma_semaphore, #tpu.memory_space<semaphore_mem>>
    %7 = tpu.memref_squeeze %6 : memref<1x!tpu.dma_semaphore, #tpu.memory_space<semaphore_mem>> -> memref<!tpu.dma_semaphore, #tpu.memory_space<semaphore_mem>>
    tpu.enqueue_dma source(%4 : memref<1x256xf32, #tpu.memory_space<any>>) target(%5 : memref<1x256xf32, #tpu.memory_space<any>>) target_semaphore(%7 : memref<!tpu.dma_semaphore, #tpu.memory_space<semaphore_mem>>)
    %c2_i32 = arith.constant 2 : i32
    %c2_i32_8 = arith.constant 2 : i32
    %c0_i32_9 = arith.constant 0 : i32
    %8 = tpu.memref_slice %arg0[%c2_i32_8, %c0_i32_9] : memref<8x512xf32, #tpu.memory_space<any>> -> memref<1x256xf32, #tpu.memory_space<any>>
    %c2_i32_10 = arith.constant 2 : i32
    %c0_i32_11 = arith.constant 0 : i32
    %9 = tpu.memref_slice %arg1[%c2_i32_10, %c0_i32_11] : memref<8x256xf32, #tpu.memory_space<any>> -> memref<1x256xf32, #tpu.memory_space<any>>
    %10 = tpu.memref_slice %arg2[%c2_i32] : memref<8x!tpu.dma_semaphore, #tpu.memory_space<semaphore_mem>> -> memref<1x!tpu.dma_semaphore, #tpu.memory_space<semaphore_mem>>
    %11 = tpu.memref_squeeze %10 : memref<1x!tpu.dma_semaphore, #tpu.memory_space<semaphore_mem>> -> memref<!tpu.dma_semaphore, #tpu.memory_space<semaphore_mem>>
    tpu.enqueue_dma source(%8 : memref<1x256xf32, #tpu.memory_space<any>>) target(%9 : memref<1x256xf32, #tpu.memory_space<any>>) target_semaphore(%11 : memref<!tpu.dma_semaphore, #tpu.memory_space<semaphore_mem>>)
    %c3_i32 = arith.constant 3 : i32
    %c3_i32_12 = arith.constant 3 : i32
    %c0_i32_13 = arith.constant 0 : i32
    %12 = tpu.memref_slice %arg0[%c3_i32_12, %c0_i32_13] : memref<8x512xf32, #tpu.memory_space<any>> -> memref<1x256xf32, #tpu.memory_space<any>>
    %c3_i32_14 = arith.constant 3 : i32
    %c0_i32_15 = arith.constant 0 : i32
    %13 = tpu.memref_slice %arg1[%c3_i32_14, %c0_i32_15] : memref<8x256xf32, #tpu.memory_space<any>> -> memref<1x256xf32, #tpu.memory_space<any>>
    %14 = tpu.memref_slice %arg2[%c3_i32] : memref<8x!tpu.dma_semaphore, #tpu.memory_space<semaphore_mem>> -> memref<1x!tpu.dma_semaphore, #tpu.memory_space<semaphore_mem>>
    %15 = tpu.memref_squeeze %14 : memref<1x!tpu.dma_semaphore, #tpu.memory_space<semaphore_mem>> -> memref<!tpu.dma_semaphore, #tpu.memory_space<semaphore_mem>>
    tpu.enqueue_dma source(%12 : memref<1x256xf32, #tpu.memory_space<any>>) target(%13 : memref<1x256xf32, #tpu.memory_space<any>>) target_semaphore(%15 : memref<!tpu.dma_semaphore, #tpu.memory_space<semaphore_mem>>)
    %c4_i32 = arith.constant 4 : i32
    %c4_i32_16 = arith.constant 4 : i32
    %c0_i32_17 = arith.constant 0 : i32
    %16 = tpu.memref_slice %arg0[%c4_i32_16, %c0_i32_17] : memref<8x512xf32, #tpu.memory_space<any>> -> memref<1x256xf32, #tpu.memory_space<any>>
    %c4_i32_18 = arith.constant 4 : i32
    %c0_i32_19 = arith.constant 0 : i32
    %17 = tpu.memref_slice %arg1[%c4_i32_18, %c0_i32_19] : memref<8x256xf32, #tpu.memory_space<any>> -> memref<1x256xf32, #tpu.memory_space<any>>
    %18 = tpu.memref_slice %arg2[%c4_i32] : memref<8x!tpu.dma_semaphore, #tpu.memory_space<semaphore_mem>> -> memref<1x!tpu.dma_semaphore, #tpu.memory_space<semaphore_mem>>
    %19 = tpu.memref_squeeze %18 : memref<1x!tpu.dma_semaphore, #tpu.memory_space<semaphore_mem>> -> memref<!tpu.dma_semaphore, #tpu.memory_space<semaphore_mem>>
    tpu.enqueue_dma source(%16 : memref<1x256xf32, #tpu.memory_space<any>>) target(%17 : memref<1x256xf32, #tpu.memory_space<any>>) target_semaphore(%19 : memref<!tpu.dma_semaphore, #tpu.memory_space<semaphore_mem>>)
    %c5_i32 = arith.constant 5 : i32
    %c5_i32_20 = arith.constant 5 : i32
    %c0_i32_21 = arith.constant 0 : i32
    %20 = tpu.memref_slice %arg0[%c5_i32_20, %c0_i32_21] : memref<8x512xf32, #tpu.memory_space<any>> -> memref<1x256xf32, #tpu.memory_space<any>>
    %c5_i32_22 = arith.constant 5 : i32
    %c0_i32_23 = arith.constant 0 : i32
    %21 = tpu.memref_slice %arg1[%c5_i32_22, %c0_i32_23] : memref<8x256xf32, #tpu.memory_space<any>> -> memref<1x256xf32, #tpu.memory_space<any>>
    %22 = tpu.memref_slice %arg2[%c5_i32] : memref<8x!tpu.dma_semaphore, #tpu.memory_space<semaphore_mem>> -> memref<1x!tpu.dma_semaphore, #tpu.memory_space<semaphore_mem>>
    %23 = tpu.memref_squeeze %22 : memref<1x!tpu.dma_semaphore, #tpu.memory_space<semaphore_mem>> -> memref<!tpu.dma_semaphore, #tpu.memory_space<semaphore_mem>>
    tpu.enqueue_dma source(%20 : memref<1x256xf32, #tpu.memory_space<any>>) target(%21 : memref<1x256xf32, #tpu.memory_space<any>>) target_semaphore(%23 : memref<!tpu.dma_semaphore, #tpu.memory_space<semaphore_mem>>)
    %c6_i32 = arith.constant 6 : i32
    %c6_i32_24 = arith.constant 6 : i32
    %c0_i32_25 = arith.constant 0 : i32
    %24 = tpu.memref_slice %arg0[%c6_i32_24, %c0_i32_25] : memref<8x512xf32, #tpu.memory_space<any>> -> memref<1x256xf32, #tpu.memory_space<any>>
    %c6_i32_26 = arith.constant 6 : i32
    %c0_i32_27 = arith.constant 0 : i32
    %25 = tpu.memref_slice %arg1[%c6_i32_26, %c0_i32_27] : memref<8x256xf32, #tpu.memory_space<any>> -> memref<1x256xf32, #tpu.memory_space<any>>
    %26 = tpu.memref_slice %arg2[%c6_i32] : memref<8x!tpu.dma_semaphore, #tpu.memory_space<semaphore_mem>> -> memref<1x!tpu.dma_semaphore, #tpu.memory_space<semaphore_mem>>
    %27 = tpu.memref_squeeze %26 : memref<1x!tpu.dma_semaphore, #tpu.memory_space<semaphore_mem>> -> memref<!tpu.dma_semaphore, #tpu.memory_space<semaphore_mem>>
    tpu.enqueue_dma source(%24 : memref<1x256xf32, #tpu.memory_space<any>>) target(%25 : memref<1x256xf32, #tpu.memory_space<any>>) target_semaphore(%27 : memref<!tpu.dma_semaphore, #tpu.memory_space<semaphore_mem>>)
    %c7_i32 = arith.constant 7 : i32
    %c7_i32_28 = arith.constant 7 : i32
    %c0_i32_29 = arith.constant 0 : i32
    %28 = tpu.memref_slice %arg0[%c7_i32_28, %c0_i32_29] : memref<8x512xf32, #tpu.memory_space<any>> -> memref<1x256xf32, #tpu.memory_space<any>>
    %c7_i32_30 = arith.constant 7 : i32
    %c0_i32_31 = arith.constant 0 : i32
    %29 = tpu.memref_slice %arg1[%c7_i32_30, %c0_i32_31] : memref<8x256xf32, #tpu.memory_space<any>> -> memref<1x256xf32, #tpu.memory_space<any>>
    %30 = tpu.memref_slice %arg2[%c7_i32] : memref<8x!tpu.dma_semaphore, #tpu.memory_space<semaphore_mem>> -> memref<1x!tpu.dma_semaphore, #tpu.memory_space<semaphore_mem>>
    %31 = tpu.memref_squeeze %30 : memref<1x!tpu.dma_semaphore, #tpu.memory_space<semaphore_mem>> -> memref<!tpu.dma_semaphore, #tpu.memory_space<semaphore_mem>>
    tpu.enqueue_dma source(%28 : memref<1x256xf32, #tpu.memory_space<any>>) target(%29 : memref<1x256xf32, #tpu.memory_space<any>>) target_semaphore(%31 : memref<!tpu.dma_semaphore, #tpu.memory_space<semaphore_mem>>)
    %c0_i32_32 = arith.constant 0 : i32
    %c0_i32_33 = arith.constant 0 : i32
    %c0_i32_34 = arith.constant 0 : i32
    %32 = tpu.memref_slice %arg0[%c0_i32_33, %c0_i32_34] : memref<8x512xf32, #tpu.memory_space<any>> -> memref<1x256xf32, #tpu.memory_space<any>>
    %c0_i32_35 = arith.constant 0 : i32
    %c0_i32_36 = arith.constant 0 : i32
    %33 = tpu.memref_slice %arg1[%c0_i32_35, %c0_i32_36] : memref<8x256xf32, #tpu.memory_space<any>> -> memref<1x256xf32, #tpu.memory_space<any>>
    %34 = tpu.memref_slice %arg2[%c0_i32_32] : memref<8x!tpu.dma_semaphore, #tpu.memory_space<semaphore_mem>> -> memref<1x!tpu.dma_semaphore, #tpu.memory_space<semaphore_mem>>
    %35 = tpu.memref_squeeze %34 : memref<1x!tpu.dma_semaphore, #tpu.memory_space<semaphore_mem>> -> memref<!tpu.dma_semaphore, #tpu.memory_space<semaphore_mem>>
    tpu.wait_dma2 semaphore(%35 : memref<!tpu.dma_semaphore, #tpu.memory_space<semaphore_mem>>) src(%32 : memref<1x256xf32, #tpu.memory_space<any>>) dst(%33 : memref<1x256xf32, #tpu.memory_space<any>>)
    %c1_i32_37 = arith.constant 1 : i32
    %c1_i32_38 = arith.constant 1 : i32
    %c0_i32_39 = arith.constant 0 : i32
    %36 = tpu.memref_slice %arg0[%c1_i32_38, %c0_i32_39] : memref<8x512xf32, #tpu.memory_space<any>> -> memref<1x256xf32, #tpu.memory_space<any>>
    %c1_i32_40 = arith.constant 1 : i32
    %c0_i32_41 = arith.constant 0 : i32
    %37 = tpu.memref_slice %arg1[%c1_i32_40, %c0_i32_41] : memref<8x256xf32, #tpu.memory_space<any>> -> memref<1x256xf32, #tpu.memory_space<any>>
    %38 = tpu.memref_slice %arg2[%c1_i32_37] : memref<8x!tpu.dma_semaphore, #tpu.memory_space<semaphore_mem>> -> memref<1x!tpu.dma_semaphore, #tpu.memory_space<semaphore_mem>>
    %39 = tpu.memref_squeeze %38 : memref<1x!tpu.dma_semaphore, #tpu.memory_space<semaphore_mem>> -> memref<!tpu.dma_semaphore, #tpu.memory_space<semaphore_mem>>
    tpu.wait_dma2 semaphore(%39 : memref<!tpu.dma_semaphore, #tpu.memory_space<semaphore_mem>>) src(%36 : memref<1x256xf32, #tpu.memory_space<any>>) dst(%37 : memref<1x256xf32, #tpu.memory_space<any>>)
    %c2_i32_42 = arith.constant 2 : i32
    %c2_i32_43 = arith.constant 2 : i32
    %c0_i32_44 = arith.constant 0 : i32
    %40 = tpu.memref_slice %arg0[%c2_i32_43, %c0_i32_44] : memref<8x512xf32, #tpu.memory_space<any>> -> memref<1x256xf32, #tpu.memory_space<any>>
    %c2_i32_45 = arith.constant 2 : i32
    %c0_i32_46 = arith.constant 0 : i32
    %41 = tpu.memref_slice %arg1[%c2_i32_45, %c0_i32_46] : memref<8x256xf32, #tpu.memory_space<any>> -> memref<1x256xf32, #tpu.memory_space<any>>
    %42 = tpu.memref_slice %arg2[%c2_i32_42] : memref<8x!tpu.dma_semaphore, #tpu.memory_space<semaphore_mem>> -> memref<1x!tpu.dma_semaphore, #tpu.memory_space<semaphore_mem>>
    %43 = tpu.memref_squeeze %42 : memref<1x!tpu.dma_semaphore, #tpu.memory_space<semaphore_mem>> -> memref<!tpu.dma_semaphore, #tpu.memory_space<semaphore_mem>>
    tpu.wait_dma2 semaphore(%43 : memref<!tpu.dma_semaphore, #tpu.memory_space<semaphore_mem>>) src(%40 : memref<1x256xf32, #tpu.memory_space<any>>) dst(%41 : memref<1x256xf32, #tpu.memory_space<any>>)
    %c3_i32_47 = arith.constant 3 : i32
    %c3_i32_48 = arith.constant 3 : i32
    %c0_i32_49 = arith.constant 0 : i32
    %44 = tpu.memref_slice %arg0[%c3_i32_48, %c0_i32_49] : memref<8x512xf32, #tpu.memory_space<any>> -> memref<1x256xf32, #tpu.memory_space<any>>
    %c3_i32_50 = arith.constant 3 : i32
    %c0_i32_51 = arith.constant 0 : i32
    %45 = tpu.memref_slice %arg1[%c3_i32_50, %c0_i32_51] : memref<8x256xf32, #tpu.memory_space<any>> -> memref<1x256xf32, #tpu.memory_space<any>>
    %46 = tpu.memref_slice %arg2[%c3_i32_47] : memref<8x!tpu.dma_semaphore, #tpu.memory_space<semaphore_mem>> -> memref<1x!tpu.dma_semaphore, #tpu.memory_space<semaphore_mem>>
    %47 = tpu.memref_squeeze %46 : memref<1x!tpu.dma_semaphore, #tpu.memory_space<semaphore_mem>> -> memref<!tpu.dma_semaphore, #tpu.memory_space<semaphore_mem>>
    tpu.wait_dma2 semaphore(%47 : memref<!tpu.dma_semaphore, #tpu.memory_space<semaphore_mem>>) src(%44 : memref<1x256xf32, #tpu.memory_space<any>>) dst(%45 : memref<1x256xf32, #tpu.memory_space<any>>)
    %c4_i32_52 = arith.constant 4 : i32
    %c4_i32_53 = arith.constant 4 : i32
    %c0_i32_54 = arith.constant 0 : i32
    %48 = tpu.memref_slice %arg0[%c4_i32_53, %c0_i32_54] : memref<8x512xf32, #tpu.memory_space<any>> -> memref<1x256xf32, #tpu.memory_space<any>>
    %c4_i32_55 = arith.constant 4 : i32
    %c0_i32_56 = arith.constant 0 : i32
    %49 = tpu.memref_slice %arg1[%c4_i32_55, %c0_i32_56] : memref<8x256xf32, #tpu.memory_space<any>> -> memref<1x256xf32, #tpu.memory_space<any>>
    %50 = tpu.memref_slice %arg2[%c4_i32_52] : memref<8x!tpu.dma_semaphore, #tpu.memory_space<semaphore_mem>> -> memref<1x!tpu.dma_semaphore, #tpu.memory_space<semaphore_mem>>
    %51 = tpu.memref_squeeze %50 : memref<1x!tpu.dma_semaphore, #tpu.memory_space<semaphore_mem>> -> memref<!tpu.dma_semaphore, #tpu.memory_space<semaphore_mem>>
    tpu.wait_dma2 semaphore(%51 : memref<!tpu.dma_semaphore, #tpu.memory_space<semaphore_mem>>) src(%48 : memref<1x256xf32, #tpu.memory_space<any>>) dst(%49 : memref<1x256xf32, #tpu.memory_space<any>>)
    %c5_i32_57 = arith.constant 5 : i32
    %c5_i32_58 = arith.constant 5 : i32
    %c0_i32_59 = arith.constant 0 : i32
    %52 = tpu.memref_slice %arg0[%c5_i32_58, %c0_i32_59] : memref<8x512xf32, #tpu.memory_space<any>> -> memref<1x256xf32, #tpu.memory_space<any>>
    %c5_i32_60 = arith.constant 5 : i32
    %c0_i32_61 = arith.constant 0 : i32
    %53 = tpu.memref_slice %arg1[%c5_i32_60, %c0_i32_61] : memref<8x256xf32, #tpu.memory_space<any>> -> memref<1x256xf32, #tpu.memory_space<any>>
    %54 = tpu.memref_slice %arg2[%c5_i32_57] : memref<8x!tpu.dma_semaphore, #tpu.memory_space<semaphore_mem>> -> memref<1x!tpu.dma_semaphore, #tpu.memory_space<semaphore_mem>>
    %55 = tpu.memref_squeeze %54 : memref<1x!tpu.dma_semaphore, #tpu.memory_space<semaphore_mem>> -> memref<!tpu.dma_semaphore, #tpu.memory_space<semaphore_mem>>
    tpu.wait_dma2 semaphore(%55 : memref<!tpu.dma_semaphore, #tpu.memory_space<semaphore_mem>>) src(%52 : memref<1x256xf32, #tpu.memory_space<any>>) dst(%53 : memref<1x256xf32, #tpu.memory_space<any>>)
    %c6_i32_62 = arith.constant 6 : i32
    %c6_i32_63 = arith.constant 6 : i32
    %c0_i32_64 = arith.constant 0 : i32
    %56 = tpu.memref_slice %arg0[%c6_i32_63, %c0_i32_64] : memref<8x512xf32, #tpu.memory_space<any>> -> memref<1x256xf32, #tpu.memory_space<any>>
    %c6_i32_65 = arith.constant 6 : i32
    %c0_i32_66 = arith.constant 0 : i32
    %57 = tpu.memref_slice %arg1[%c6_i32_65, %c0_i32_66] : memref<8x256xf32, #tpu.memory_space<any>> -> memref<1x256xf32, #tpu.memory_space<any>>
    %58 = tpu.memref_slice %arg2[%c6_i32_62] : memref<8x!tpu.dma_semaphore, #tpu.memory_space<semaphore_mem>> -> memref<1x!tpu.dma_semaphore, #tpu.memory_space<semaphore_mem>>
    %59 = tpu.memref_squeeze %58 : memref<1x!tpu.dma_semaphore, #tpu.memory_space<semaphore_mem>> -> memref<!tpu.dma_semaphore, #tpu.memory_space<semaphore_mem>>
    tpu.wait_dma2 semaphore(%59 : memref<!tpu.dma_semaphore, #tpu.memory_space<semaphore_mem>>) src(%56 : memref<1x256xf32, #tpu.memory_space<any>>) dst(%57 : memref<1x256xf32, #tpu.memory_space<any>>)
    %c7_i32_67 = arith.constant 7 : i32
    %c7_i32_68 = arith.constant 7 : i32
    %c0_i32_69 = arith.constant 0 : i32
    %60 = tpu.memref_slice %arg0[%c7_i32_68, %c0_i32_69] : memref<8x512xf32, #tpu.memory_space<any>> -> memref<1x256xf32, #tpu.memory_space<any>>
    %c7_i32_70 = arith.constant 7 : i32
    %c0_i32_71 = arith.constant 0 : i32
    %61 = tpu.memref_slice %arg1[%c7_i32_70, %c0_i32_71] : memref<8x256xf32, #tpu.memory_space<any>> -> memref<1x256xf32, #tpu.memory_space<any>>
    %62 = tpu.memref_slice %arg2[%c7_i32_67] : memref<8x!tpu.dma_semaphore, #tpu.memory_space<semaphore_mem>> -> memref<1x!tpu.dma_semaphore, #tpu.memory_space<semaphore_mem>>
    %63 = tpu.memref_squeeze %62 : memref<1x!tpu.dma_semaphore, #tpu.memory_space<semaphore_mem>> -> memref<!tpu.dma_semaphore, #tpu.memory_space<semaphore_mem>>
    tpu.wait_dma2 semaphore(%63 : memref<!tpu.dma_semaphore, #tpu.memory_space<semaphore_mem>>) src(%60 : memref<1x256xf32, #tpu.memory_space<any>>) dst(%61 : memref<1x256xf32, #tpu.memory_space<any>>)
    return
  }
}

</mosaic_0001>

<llo_original>
// kernel: tpu_custom_call.1
$region0: #{tpu_custom_call.1}
  #allocation0 [shape = 'u32[]', space=smem, size = 0x4, offset = 0x4, fixed_abs, tag = 'smem constant byte address 0x4 - core index']
  #allocation1 [shape = 'u32[144,128]{1,0:T(1,128)}', space=vmem, size = 0x12000, scoped, tag = 'internal scratch']
  #allocation2 [shape = 's32[8]{0}', space=sflag, size = 0x20, scoped, tag = 'scratch operand']
  #allocation3 [shape = 's32[]', space=sflag, size = 0x4, offset = 0, fixed_abs, tag = 'sflag constant byte address 0x0 - dummy sync flag']
  #allocation5 [shape = 's32[]', space=sflag, size = 0x4, offset = 0, fixed_abs, tag = 'sflag constant byte address 0x0 - dummy sync flag']
  #allocation7 [shape = 's32[]', space=sflag, size = 0x4, offset = 0, fixed_abs, tag = 'sflag constant byte address 0x0 - dummy sync flag']
  #allocation9 [shape = 's32[]', space=sflag, size = 0x4, offset = 0, fixed_abs, tag = 'sflag constant byte address 0x0 - dummy sync flag']
  #allocation11 [shape = 's32[]', space=sflag, size = 0x4, offset = 0, fixed_abs, tag = 'sflag constant byte address 0x0 - dummy sync flag']
  #allocation13 [shape = 's32[]', space=sflag, size = 0x4, offset = 0, fixed_abs, tag = 'sflag constant byte address 0x0 - dummy sync flag']
  #allocation15 [shape = 's32[]', space=sflag, size = 0x4, offset = 0, fixed_abs, tag = 'sflag constant byte address 0x0 - dummy sync flag']
  #allocation17 [shape = 's32[]', space=sflag, size = 0x4, offset = 0, fixed_abs, tag = 'sflag constant byte address 0x0 - dummy sync flag']
  %s0 = inlined_call_operand.hbm [shape: f32[8,512], index: 0, kind: input, shape index: {}]
  %s1 = inlined_call_operand.hbm [shape: f32[8,256], index: 1, kind: output, shape index: {}]
  %s2 = sld [smem:[#allocation0]]
  $region2: #{tpu_custom_call.1} parent=0
    _
  %s4 = ssub.s32 1, %s2
  %s5 = scalar_select 0, %s4, %s2
  $region1: #{tpu_custom_call.1} parent=0
    #allocation4 [shape = 'u32[3]{0}', space=smem, size = 0xc, scoped, tag = 'DMA stride descriptor']
    #allocation6 [shape = 'u32[3]{0}', space=smem, size = 0xc, scoped, tag = 'DMA stride descriptor']
    #allocation8 [shape = 'u32[3]{0}', space=smem, size = 0xc, scoped, tag = 'DMA stride descriptor']
    #allocation10 [shape = 'u32[3]{0}', space=smem, size = 0xc, scoped, tag = 'DMA stride descriptor']
    #allocation12 [shape = 'u32[3]{0}', space=smem, size = 0xc, scoped, tag = 'DMA stride descriptor']
    #allocation14 [shape = 'u32[3]{0}', space=smem, size = 0xc, scoped, tag = 'DMA stride descriptor']
    #allocation16 [shape = 'u32[3]{0}', space=smem, size = 0xc, scoped, tag = 'DMA stride descriptor']
    #allocation18 [shape = 'u32[3]{0}', space=smem, size = 0xc, scoped, tag = 'DMA stride descriptor']
    %s7 = sshll.u32 1, 14
    %s8 = sxor.u32 4294967295, %s7
    %s11 = sshll.u32 3, 24
    %s12 = sxor.u32 4294967295, %s11
    %s13 = sand.u32 0, %s12
    %s15 = sor.u32 %s13, 0
    %18 = sst [smem:[#allocation4]] 128
    %s19 = scalar_lea.smem [#allocation4], 1
    %20 = sst [smem:[%s19]] 128
    %s21 = scalar_lea.smem [#allocation4], 2
    %22 = sst [smem:[%s21]] 1
    %24 = dma.general %s0, 32, %s1, [#allocation2], [#allocation3], [#allocation4], %s15, 0
    %s25 = scalar_lea.hbm %s0, 16
    %s26 = scalar_lea.hbm %s1, 16
    %s27 = scalar_lea.sflag [#allocation2], 1
    %s29 = sshll.u32 1, 14
    %s30 = sxor.u32 4294967295, %s29
    %s33 = sshll.u32 3, 24
    %s34 = sxor.u32 4294967295, %s33
    %s35 = sand.u32 0, %s34
    %s37 = sor.u32 %s35, 0
    %40 = sst [smem:[#allocation6]] 128
    %s41 = scalar_lea.smem [#allocation6], 1
    %42 = sst [smem:[%s41]] 128
    %s43 = scalar_lea.smem [#allocation6], 2
    %44 = sst [smem:[%s43]] 1
    %46 = dma.general %s25, 32, %s26, %s27, [#allocation5], [#allocation6], %s37, 0
    %s47 = scalar_lea.hbm %s0, 32
    %s48 = scalar_lea.hbm %s1, 32
    %s49 = scalar_lea.sflag [#allocation2], 2
    %s51 = sshll.u32 1, 14
    %s52 = sxor.u32 4294967295, %s51
    %s55 = sshll.u32 3, 24
    %s56 = sxor.u32 4294967295, %s55
    %s57 = sand.u32 0, %s56
    %s59 = sor.u32 %s57, 0
    %62 = sst [smem:[#allocation8]] 128
    %s63 = scalar_lea.smem [#allocation8], 1
    %64 = sst [smem:[%s63]] 128
    %s65 = scalar_lea.smem [#allocation8], 2
    %66 = sst [smem:[%s65]] 1
    %68 = dma.general %s47, 32, %s48, %s49, [#allocation7], [#allocation8], %s59, 0
    %s69 = scalar_lea.hbm %s0, 48
    %s70 = scalar_lea.hbm %s1, 48
    %s71 = scalar_lea.sflag [#allocation2], 3
    %s73 = sshll.u32 1, 14
    %s74 = sxor.u32 4294967295, %s73
    %s77 = sshll.u32 3, 24
    %s78 = sxor.u32 4294967295, %s77
    %s79 = sand.u32 0, %s78
    %s81 = sor.u32 %s79, 0
    %84 = sst [smem:[#allocation10]] 128
    %s85 = scalar_lea.smem [#allocation10], 1
    %86 = sst [smem:[%s85]] 128
    %s87 = scalar_lea.smem [#allocation10], 2
    %88 = sst [smem:[%s87]] 1
    %90 = dma.general %s69, 32, %s70, %s71, [#allocation9], [#allocation10], %s81, 0
    %s91 = scalar_lea.hbm %s0, 64
    %s92 = scalar_lea.hbm %s1, 64
    %s93 = scalar_lea.sflag [#allocation2], 4
    %s95 = sshll.u32 1, 14
    %s96 = sxor.u32 4294967295, %s95
    %s99 = sshll.u32 3, 24
    %s100 = sxor.u32 4294967295, %s99
    %s101 = sand.u32 0, %s100
    %s103 = sor.u32 %s101, 0
    %106 = sst [smem:[#allocation12]] 128
    %s107 = scalar_lea.smem [#allocation12], 1
    %108 = sst [smem:[%s107]] 128
    %s109 = scalar_lea.smem [#allocation12], 2
    %110 = sst [smem:[%s109]] 1
    %112 = dma.general %s91, 32, %s92, %s93, [#allocation11], [#allocation12], %s103, 0
    %s113 = scalar_lea.hbm %s0, 80
    %s114 = scalar_lea.hbm %s1, 80
    %s115 = scalar_lea.sflag [#allocation2], 5
    %s117 = sshll.u32 1, 14
    %s118 = sxor.u32 4294967295, %s117
    %s121 = sshll.u32 3, 24
    %s122 = sxor.u32 4294967295, %s121
    %s123 = sand.u32 0, %s122
    %s125 = sor.u32 %s123, 0
    %128 = sst [smem:[#allocation14]] 128
    %s129 = scalar_lea.smem [#allocation14], 1
    %130 = sst [smem:[%s129]] 128
    %s131 = scalar_lea.smem [#allocation14], 2
    %132 = sst [smem:[%s131]] 1
    %134 = dma.general %s113, 32, %s114, %s115, [#allocation13], [#allocation14], %s125, 0
    %s135 = scalar_lea.hbm %s0, 96
    %s136 = scalar_lea.hbm %s1, 96
    %s137 = scalar_lea.sflag [#allocation2], 6
    %s139 = sshll.u32 1, 14
    %s140 = sxor.u32 4294967295, %s139
    %s143 = sshll.u32 3, 24
    %s144 = sxor.u32 4294967295, %s143
    %s145 = sand.u32 0, %s144
    %s147 = sor.u32 %s145, 0
    %150 = sst [smem:[#allocation16]] 128
    %s151 = scalar_lea.smem [#allocation16], 1
    %152 = sst [smem:[%s151]] 128
    %s153 = scalar_lea.smem [#allocation16], 2
    %154 = sst [smem:[%s153]] 1
    %156 = dma.general %s135, 32, %s136, %s137, [#allocation15], [#allocation16], %s147, 0
    %s157 = scalar_lea.hbm %s0, 112
    %s158 = scalar_lea.hbm %s1, 112
    %s159 = scalar_lea.sflag [#allocation2], 7
    %s161 = sshll.u32 1, 14
    %s162 = sxor.u32 4294967295, %s161
    %s165 = sshll.u32 3, 24
    %s166 = sxor.u32 4294967295, %s165
    %s167 = sand.u32 0, %s166
    %s169 = sor.u32 %s167, 0
    %172 = sst [smem:[#allocation18]] 128
    %s173 = scalar_lea.smem [#allocation18], 1
    %174 = sst [smem:[%s173]] 128
    %s175 = scalar_lea.smem [#allocation18], 2
    %176 = sst [smem:[%s175]] 1
    %178 = dma.general %s157, 32, %s158, %s159, [#allocation17], [#allocation18], %s169, 0
    %s179 = smul.u32 1, 2
    %s180 = sshll.u32 %s179, 4
    %181 = dma.done [#allocation2], %s180
    %s182 = sshll.u32 %s179, 4
    %183 = dma.done %s27, %s182
    %s184 = sshll.u32 %s179, 4
    %185 = dma.done %s49, %s184
    %s186 = sshll.u32 %s179, 4
    %187 = dma.done %s71, %s186
    %s188 = sshll.u32 %s179, 4
    %189 = dma.done %s93, %s188
    %s190 = sshll.u32 %s179, 4
    %191 = dma.done %s115, %s190
    %s192 = sshll.u32 %s179, 4
    %193 = dma.done %s137, %s192
    %s194 = sshll.u32 %s179, 4
    %195 = dma.done %s159, %s194
  %196 = vsyncmov [#allocation2]
  %s197 = vpop.sfrf %196
  %p198 = scmp.eq.s32.totalorder %s197, 0
  %p199 = pneg %p198
  %201 = shalt.err (%p199)
  %s202 = scalar_lea.sflag [#allocation2], 1
  %203 = vsyncmov %s202
  %s204 = vpop.sfrf %203
  %p205 = scmp.eq.s32.totalorder %s204, 0
  %p206 = pneg %p205
  %208 = shalt.err (%p206)
  %s209 = scalar_lea.sflag [#allocation2], 2
  %210 = vsyncmov %s209
  %s211 = vpop.sfrf %210
  %p212 = scmp.eq.s32.totalorder %s211, 0
  %p213 = pneg %p212
  %215 = shalt.err (%p213)
  %s216 = scalar_lea.sflag [#allocation2], 3
  %217 = vsyncmov %s216
  %s218 = vpop.sfrf %217
  %p219 = scmp.eq.s32.totalorder %s218, 0
  %p220 = pneg %p219
  %222 = shalt.err (%p220)
  %s223 = scalar_lea.sflag [#allocation2], 4
  %224 = vsyncmov %s223
  %s225 = vpop.sfrf %224
  %p226 = scmp.eq.s32.totalorder %s225, 0
  %p227 = pneg %p226
  %229 = shalt.err (%p227)
  %s230 = scalar_lea.sflag [#allocation2], 5
  %231 = vsyncmov %s230
  %s232 = vpop.sfrf %231
  %p233 = scmp.eq.s32.totalorder %s232, 0
  %p234 = pneg %p233
  %236 = shalt.err (%p234)
  %s237 = scalar_lea.sflag [#allocation2], 6
  %238 = vsyncmov %s237
  %s239 = vpop.sfrf %238
  %p240 = scmp.eq.s32.totalorder %s239, 0
  %p241 = pneg %p240
  %243 = shalt.err (%p241)
  %s244 = scalar_lea.sflag [#allocation2], 7
  %245 = vsyncmov %s244
  %s246 = vpop.sfrf %245
  %p247 = scmp.eq.s32.totalorder %s246, 0
  %p248 = pneg %p247
  %250 = shalt.err (%p248)

</llo_original>
